<compile_context>
chip_gen: v5e
topology: v5e:2x2
jax: 0.10.0
libtpu: 0.0.40
codegen_flags: <defaults>
</compile_context>

<pallas_src>
import math

import jax
import jax.numpy as jnp
from jax.experimental import pallas as pl
from jax.experimental.pallas import tpu as pltpu

_INV_2_24 = float(1.0 / (1 << 24))


# ----------------------------------------------------------------------------
# Kernels
# ----------------------------------------------------------------------------
def _uniform_prng_kernel(seed_ref, params_ref, out_ref):
    """Write-only kernel: HW PRNG -> fused affine -> output tile."""
    i = pl.program_id(0)
    # Two independent seed words (seed, tile id): decorrelated per-tile streams,
    # deterministic under the "parallel" grid axis (megacore on v7x).
    pltpu.prng_seed(seed_ref[0], i)
    bits = pltpu.bitcast(pltpu.prng_random_bits(out_ref.shape), jnp.uint32)
    u24 = (bits >> jnp.uint32(8)).astype(jnp.float32)   # integer in [0, 2^24)
    # out = low + u24 * ((high - low) * 2^-24)
    out_ref[...] = params_ref[0] + u24 * params_ref[1]


def _uniform_bits_kernel(params_ref, bits_ref, out_ref):
    """Portable fallback (non-TPU / interpret only): bits come in as an input."""
    u24 = (bits_ref[...] >> jnp.uint32(8)).astype(jnp.float32)
    out_ref[...] = params_ref[0] + u24 * params_ref[1]


# ----------------------------------------------------------------------------
# Layout / tiling heuristics (all static Python — wrapper stays jittable)
# ----------------------------------------------------------------------------
def _choose_layout(n):
    """Pick a lane-dense (rows, lane) slab; exact fit (free reshape) whenever a
    lane that is a multiple of 128 divides n with rows % 8 == 0."""
    for lane in range(4096, 127, -128):
        if n % lane == 0 and (n // lane) % 8 == 0:
            return n // lane, lane, False              # exact fit, free reshape
    # Padded fallback (rare shapes): costs one extra slice pass on the slab.
    lane = 512
    rows = ((pl.cdiv(n, lane) + 7) // 8) * 8
    return rows, lane, True


def _choose_block_rows(rows, lane):
    """~4 MiB output blocks (8 MiB double-buffered: fits default scoped VMEM on
    v5e/v6e/v7x). Prefer a divisor of `rows` near the target; never collapse
    toward tiny blocks; otherwise allow a partial last block via cdiv grid."""
    bytes_per_row = lane * 4
    target = max(8, ((4 << 20) // bytes_per_row) // 8 * 8)
    if rows <= target:
        # Whole slab fits in one block: split in two for v7x megacore when the
        # slab is big enough for the extra grid step to be worthwhile.
        if rows >= 16 and rows * bytes_per_row >= (1 << 19):
            return ((rows // 2 + 7) // 8) * 8
        return rows
    br = target
    while br >= max(8, target // 2):
        if rows % br == 0:
            return br                                   # exact grid
        br -= 8
    return target                                       # partial last block


# ----------------------------------------------------------------------------
# Wrapper (jittable with static `size`)
# ----------------------------------------------------------------------------
def learnable_uniform_sample(size, low, high, seed):
    """Samples Uniform(low, high) of shape `size` with a Pallas TPU kernel."""
    size = tuple(int(s) for s in size)
    n = int(math.prod(size)) if size else 1
    rows, lane, padded = _choose_layout(n)
    br = _choose_block_rows(rows, lane)
    grid = (pl.cdiv(rows, br),)

    low32 = jnp.asarray(low, jnp.float32)
    high32 = jnp.asarray(high, jnp.float32)
    # Fused scale: out = low + u24 * ((high - low) * 2^-24)
    params = jnp.stack([low32, (high32 - low32) * jnp.float32(_INV_2_24)])
    seed_arr = (jnp.asarray(seed, jnp.int32) & jnp.int32(0x7FFFFFFF)).reshape((1,))

    out_shape = jax.ShapeDtypeStruct((rows, lane), jnp.float32)
    out_spec = pl.BlockSpec((br, lane), lambda i: (i, 0))

    on_tpu = jax.devices()[0].platform == "tpu"
    if on_tpu:
        slab = pl.pallas_call(
            _uniform_prng_kernel,
            out_shape=out_shape,
            grid=grid,
            in_specs=[
                pl.BlockSpec(memory_space=pltpu.MemorySpace.SMEM),  # seed
                pl.BlockSpec(memory_space=pltpu.MemorySpace.SMEM),  # params
            ],
            out_specs=out_spec,
            compiler_params=pltpu.CompilerParams(
                dimension_semantics=("parallel",)),
        )(seed_arr, params)
    else:
        # Portable path (CPU / interpret only): 3x HBM traffic, never used on TPU.
        bits = jax.random.bits(jax.random.PRNGKey(seed_arr[0]), (rows, lane),
                               dtype=jnp.uint32)
        slab = pl.pallas_call(
            _uniform_bits_kernel,
            out_shape=out_shape,
            grid=grid,
            in_specs=[
                pl.BlockSpec(memory_space=pltpu.MemorySpace.SMEM),   # params
                pl.BlockSpec((br, lane), lambda i: (i, 0)),          # bits
            ],
            out_specs=out_spec,
        )(params, bits)

    if padded:
        return slab.reshape(-1)[:n].reshape(size)
    return slab.reshape(size)


class LearnableUniformDistribution:
    """JAX/Pallas mirror of the PyTorch module (low/high are scalar params)."""

    def __init__(self, low_init=0.0, high_init=1.0):
        self.low = jnp.float32(low_init)
        self.high = jnp.float32(high_init)

    def forward(self, size, seed):
        return learnable_uniform_sample(size, self.low, self.high, seed)

    def get_parameters(self):
        return (self.low, self.high)


if __name__ == "__main__":
    # Deterministic parameter init (matches nn.Module __init__ defaults).
    module = LearnableUniformDistribution(low_init=0.0, high_init=1.0)

    # Deterministic example "input": the requested sample shape + a traced seed
    # derived from PRNGKey(0) (stays on device — no host sync).
    seed = jax.random.randint(jax.random.PRNGKey(0), (), 0, 2**31 - 1)
    size = (2, 4, 16, 16)

    sampler = jax.jit(learnable_uniform_sample, static_argnums=(0,))
    out = sampler(size, module.low, module.high, seed)
    out = jax.block_until_ready(out)

    assert out.shape == size, out.shape
    assert out.dtype == jnp.float32, out.dtype
    assert bool(jnp.all(out >= module.low)) and bool(jnp.all(out < module.high))

    print("KERNEL_OK")
</pallas_src>

<mosaic_0001>
module attributes {stable_mosaic.version = 11 : i64} {
  func.func @_uniform_bits_kernel(%arg0: i32, %arg1: memref<2xf32, #tpu.memory_space<smem>>, %arg2: memref<8x256xi32, #tpu.memory_space<vmem>>, %arg3: memref<8x256xf32, #tpu.memory_space<vmem>>) attributes {dimension_semantics = [#tpu.dimension_semantics<arbitrary>], iteration_bounds = array<i64: 1>, scalar_prefetch = 0 : i64, scratch_operands = 0 : i64, tpu.core_type = #tpu.core_type<tc>, window_params = [{transform_indices = @transform_0, window_bounds = array<i64: 2>}, {transform_indices = @transform_1, window_bounds = array<i64: 8, 256>}, {transform_indices = @transform_2, window_bounds = array<i64: 8, 256>}]} {
    %c0 = arith.constant 0 : index
    %c0_0 = arith.constant 0 : index
    %0 = vector.load %arg2[%c0, %c0_0] : memref<8x256xi32, #tpu.memory_space<vmem>>, vector<8x256xi32>
    %c8_i32 = arith.constant 8 : i32
    %1 = vector.broadcast %c8_i32 : i32 to vector<8x256xi32>
    %2 = arith.shrui %0, %1 : vector<8x256xi32>
    %3 = arith.uitofp %2 : vector<8x256xi32> to vector<8x256xf32>
    %c0_1 = arith.constant 0 : index
    %4 = memref.load %arg1[%c0_1] : memref<2xf32, #tpu.memory_space<smem>>
    %c1 = arith.constant 1 : index
    %5 = memref.load %arg1[%c1] : memref<2xf32, #tpu.memory_space<smem>>
    %6 = vector.broadcast %5 : f32 to vector<8x256xf32>
    %7 = arith.mulf %3, %6 : vector<8x256xf32>
    %8 = vector.broadcast %4 : f32 to vector<8x256xf32>
    %9 = arith.addf %8, %7 : vector<8x256xf32>
    %c0_2 = arith.constant 0 : index
    %c0_3 = arith.constant 0 : index
    %10 = vector.load %arg3[%c0_2, %c0_3] : memref<8x256xf32, #tpu.memory_space<vmem>>, vector<8x256xf32>
    tpu.vector_store %arg3[%c0_2, %c0_3], %9 {strides = array<i32>} : memref<8x256xf32, #tpu.memory_space<vmem>>, vector<8x256xf32>,
    return
  }
  func.func @transform_0(%arg0: i32) -> i32 {
    %c0_i32 = arith.constant 0 : i32
    %c0_i32_0 = arith.constant 0 : i32
    return %c0_i32 : i32
  }
  func.func @transform_1(%arg0: i32) -> (i32, i32) {
    %c0_i32 = arith.constant 0 : i32
    %c0_i32_0 = arith.constant 0 : i32
    return %arg0, %c0_i32 : i32, i32
  }
  func.func @transform_2(%arg0: i32) -> (i32, i32) {
    %c0_i32 = arith.constant 0 : i32
    %c0_i32_0 = arith.constant 0 : i32
    return %arg0, %c0_i32 : i32, i32
  }
}

</mosaic_0001>

<llo_original>
// kernel: learnable_uniform_sample.1
$region0: #{learnable_uniform_sample.1}
  #allocation0 [shape = 'u32[]', space=smem, size = 0x4, offset = 0x4, fixed_abs, tag = 'smem constant byte address 0x4 - core index']
  #allocation1 [shape = 'u32[72,128]{1,0:T(1,128)}', space=vmem, size = 0x9000, scoped, tag = 'internal scratch']
  %s0 = inlined_call_operand.vmem [shape: f32[2], index: 0, kind: input, shape index: {}]
  %s1 = inlined_call_operand.vmem [shape: u32[8,256], index: 1, kind: input, shape index: {}]
  %s2 = inlined_call_operand.vmem [shape: f32[8,256], index: 2, kind: output, shape index: {}]
  %s3 = sld [smem:[#allocation0]]
  $region22: #{learnable_uniform_sample.1} parent=0
    _
  %s5 = ssub.s32 1, %s3
  %s6 = scalar_select 0, %s5, %s3
  $region1: #{learnable_uniform_sample.1} parent=0
    #allocation2 [shape = 'u8[512]{0}', space=smem, size = 0x200, scoped, tag = 'input window, operand 0, single buffered']
    #allocation3 [shape = 's32[1]{0}', space=sflag, size = 0x4, scoped, tag = 'scoped memory for learnable_uniform_sample.1']
    %7 = vsyncpa [#allocation3], 0
    // Predicated region
    $region2: #{learnable_uniform_sample.1} parent=1 // pred_check
      _
    $region3: #{learnable_uniform_sample.1} parent=1 // pred_check_branch
      %9 = sbr.rel (0) target = $region5
    $region4: #{learnable_uniform_sample.1} parent=1 // pred_region
      %11 = vsyncadd [#allocation3], 0
      %s13 = sshll.u32 %s0, 4
      %s14 = int_to_ptr.vmem [resolvable:$true] %s13
      %16 = dma.vmem_to_smem %s14, 16, [#allocation2], [#allocation3]
    $region5: #{learnable_uniform_sample.1} parent=1 // pred_fallthru
      _
    // Predicated region
    $region6: #{learnable_uniform_sample.1} parent=1 // pred_check
      _
    $region7: #{learnable_uniform_sample.1} parent=1 // pred_check_branch
      %18 = sbr.rel (0) target = $region9
    $region8: #{learnable_uniform_sample.1} parent=1 // pred_region
      _
    $region9: #{learnable_uniform_sample.1} parent=1 // pred_fallthru
      _
    // Predicated region
    $region10: #{learnable_uniform_sample.1} parent=1 // pred_check
      _
    $region11: #{learnable_uniform_sample.1} parent=1 // pred_check_branch
      %20 = sbr.rel (0) target = $region13
    $region12: #{learnable_uniform_sample.1} parent=1 // pred_region
      %22 = dma.done [#allocation3], 16
    $region13: #{learnable_uniform_sample.1} parent=1 // pred_fallthru
      _
    %23 = sfence
    %v24 = vld [vmem:[%s1] sm:$0xff]
    %v25 = vld [vmem:[%s1 + $0x8] sm:$0xff]
    %v26 = vshrl.u32 %v24, 8
    %v27 = vshrl.u32 %v25, 8
    %v28 = vshrl.u32 %v26, 16
    %v29 = vand.u32 %v26, 65535
    %v30 = vcvt.s32.f32 %v28
    %v31 = vmul.f32 %v30, 65536.0
    %v32 = vcvt.s32.f32 %v29
    %v33 = vadd.f32 %v31, %v32
    %v34 = vshrl.u32 %v27, 16
    %v35 = vand.u32 %v27, 65535
    %v36 = vcvt.s32.f32 %v34
    %v37 = vmul.f32 %v36, 65536.0
    %v38 = vcvt.s32.f32 %v35
    %v39 = vadd.f32 %v37, %v38
    %s40 = sld [smem:[#allocation2]]
    %s41 = sld [smem:[#allocation2 + $0x1]]
    %v42 = vstv %s41
    %v43 = vmul.f32 %v33, %v42
    %v44 = vmul.f32 %v39, %v42
    %v45 = vstv %s40
    %v46 = vadd.f32 %v45, %v43
    %v47 = vadd.f32 %v45, %v44
    %48 = vst [vmem:[%s2] sm:$0xff] %v46
    %49 = vst [vmem:[%s2 + $0x8] sm:$0xff] %v47
    // Predicated region
    $region14: #{learnable_uniform_sample.1} parent=1 // pred_check
      _
    $region15: #{learnable_uniform_sample.1} parent=1 // pred_check_branch
      %51 = sbr.rel (0) target = $region17
    $region16: #{learnable_uniform_sample.1} parent=1 // pred_region
      _
    $region17: #{learnable_uniform_sample.1} parent=1 // pred_fallthru
      _
    // Predicated region
    $region18: #{learnable_uniform_sample.1} parent=1 // pred_check
      _
    $region19: #{learnable_uniform_sample.1} parent=1 // pred_check_branch
      %53 = sbr.rel (0) target = $region21
    $region20: #{learnable_uniform_sample.1} parent=1 // pred_region
      _
    $region21: #{learnable_uniform_sample.1} parent=1 // pred_fallthru
      _
    %54 = vsyncpa [#allocation3], 1

</llo_original>
